<compile_context>
chip_gen: v5e
topology: v5e:2x2
jax: 0.10.0
libtpu: 0.0.40
codegen_flags: <defaults>
</compile_context>

<pallas_src>
import functools

import numpy as np
import jax
import jax.numpy as jnp
from jax.experimental import pallas as pl
from jax.experimental.pallas import tpu as pltpu


# ----------------------------------------------------------------------------
# Real spherical harmonics, cartesian, degree 3 (rsh_cart_3).  Feature-major:
# d is (3, n), each row (1, n).  Used by the pure-JAX reference only.
# ----------------------------------------------------------------------------
def _sh3_rows(d):
  x = d[0:1, :]
  y = d[1:2, :]
  z = d[2:3, :]
  x2, y2, z2 = x * x, y * y, z * z
  xy, xz, yz = x * y, x * z, y * z
  one = jnp.ones_like(x)
  return [
      0.282094791773878 * one,
      -0.48860251190292 * y,
      0.48860251190292 * z,
      -0.48860251190292 * x,
      1.09254843059208 * xy,
      -1.09254843059208 * yz,
      0.94617469575756 * z2 - 0.31539156525252,
      -1.09254843059208 * xz,
      0.54627421529604 * x2 - 0.54627421529604 * y2,
      -0.590043589926644 * y * (3.0 * x2 - y2),
      2.89061144264055 * xy * z,
      0.304697199642977 * y * (1.0 - 5.0 * z2),
      0.373176332590115 * z * (5.0 * z2 - 3.0),
      0.304697199642977 * x * (1.0 - 5.0 * z2),
      1.44530572132028 * z * (x2 - y2),
      -0.590043589926644 * x * (x2 - 3.0 * y2),
  ]


def rsh_cart_3_jnp(dirs):
  """Plain-JAX (N, 3) -> (N, 16); reference only."""
  return jnp.concatenate(_sh3_rows(dirs.T), axis=0).T


# ----------------------------------------------------------------------------
# Decomposition of the degree-3 SH basis into  SH = C + L @ [x,y,z] + Q @ m
# where m is the vector of raw (non-constant, non-linear) monomials in the
# order the kernel writes them into the scratch:
#   [x2, y2, z2, x3, y3, z3, xy, xz, yz, x2y, xy2, x2z, y2z, xz2, yz2, xyz]
# (multi-row groups placed so no scratch store crosses an 8-sublane boundary).
# ----------------------------------------------------------------------------
_N_MONO = 16
(_X2, _Y2, _Z2, _X3, _Y3, _Z3, _XY, _XZ,
 _YZ, _X2Y, _XY2, _X2Z, _Y2Z, _XZ2, _YZ2, _XYZ) = range(_N_MONO)


def _sh3_decomposition():
  C = np.zeros((16, 1), np.float64)
  L = np.zeros((16, 3), np.float64)          # columns: x, y, z
  Q = np.zeros((16, _N_MONO), np.float64)
  c1, c2 = 0.48860251190292, 1.09254843059208
  c6, c8, c9, c10 = 0.590043589926644, 0.304697199642977, 0.373176332590115, 1.44530572132028
  C[0, 0] = 0.282094791773878
  L[1, 1] = -c1
  L[2, 2] = c1
  L[3, 0] = -c1
  Q[4, _XY] = c2
  Q[5, _YZ] = -c2
  Q[6, _Z2] = 0.94617469575756
  C[6, 0] = -0.31539156525252
  Q[7, _XZ] = -c2
  Q[8, _X2] = 0.54627421529604
  Q[8, _Y2] = -0.54627421529604
  Q[9, _X2Y] = -3.0 * c6
  Q[9, _Y3] = c6
  Q[10, _XYZ] = 2.89061144264055
  L[11, 1] = c8
  Q[11, _YZ2] = -5.0 * c8
  Q[12, _Z3] = 5.0 * c9
  L[12, 2] = -3.0 * c9
  L[13, 0] = c8
  Q[13, _XZ2] = -5.0 * c8
  Q[14, _X2Z] = c10
  Q[14, _Y2Z] = -c10
  Q[15, _X3] = -c6
  Q[15, _XY2] = 3.0 * c6
  return C, L, Q


# ----------------------------------------------------------------------------
# Pallas kernel.  Everything feature-major: (rows, tile_n), rows on sublanes,
# points on lanes.  All in-kernel math in f32.
# ----------------------------------------------------------------------------
def _affine_mlp_kernel(hidden_layers, rows_in, slab_ref, Wlin_ref, Wnl_ref,
                       bfold_ref, *refs):
  """Per-tile shapes (tn = lane tile width):
       slab_ref  (rows_in, tn)   io_dtype   rows 0..2 = dir(x,y,z), 3.. = feats
       Wlin_ref  (2*rows_in, 8)  f32        folded linear SH map (cols 3..7 = 0)
       Wnl_ref   (2*rows_in, 16) f32        folded nonlinear (monomial) SH map
       bfold_ref (2*rows_in, 1)  f32        folded bias (SH constants included)
       per GLU layer: W (2*hidden, feat_in) f32, b (2*hidden, 1) f32
       Wf (out_rows, feat_in) f32, bf (out_rows, 1) f32
       out_ref   (out_rows, tn)  io_dtype
       mono_ref  (16, tn)        f32  VMEM scratch
  """
  glu_refs = refs[:2 * hidden_layers]
  Wf_ref, bf_ref, out_ref, mono_ref = refs[2 * hidden_layers:]

  slab = slab_ref[...].astype(jnp.float32)                       # (rows_in, tn)
  d = slab[0:3, :]                                               # x, y, z rows

  # --- raw SH monomials into the (16, tn) scratch (constants already folded
  #     into the projection weights; no per-row constant multiplies here).
  d2 = d * d                                                     # x2, y2, z2
  mono_ref[0:3, :] = d2
  mono_ref[3:6, :] = d2 * d                                      # x3, y3, z3
  x = d[0:1, :]
  y = d[1:2, :]
  z = d[2:3, :]
  x2 = d2[0:1, :]
  y2 = d2[1:2, :]
  z2 = d2[2:3, :]
  xy = x * y
  mono_ref[6:7, :] = xy
  mono_ref[7:8, :] = x * z
  mono_ref[8:9, :] = y * z
  mono_ref[9:10, :] = x2 * y
  mono_ref[10:11, :] = x * y2
  mono_ref[11:12, :] = x2 * z
  mono_ref[12:13, :] = y2 * z
  mono_ref[13:14, :] = x * z2
  mono_ref[14:15, :] = y * z2
  mono_ref[15:16, :] = xy * z

  # --- fused a||b projection: two MXU matmuls (K=8 aligned slab tile, K=16
  #     monomials).  Output rows are pre-placed so the split below is aligned.
  ab = jnp.dot(Wlin_ref[...], slab[0:8, :], preferred_element_type=jnp.float32)
  ab = ab + jnp.dot(Wnl_ref[...], mono_ref[...],
                    preferred_element_type=jnp.float32)
  ab = ab + bfold_ref[...]                                       # (2*rows_in, tn)

  # --- affine modulation: non-feature rows of a/b are zero -> those h rows
  #     are exactly zero (their weight columns downstream are zero too).
  h = slab * ab[:rows_in, :] + ab[rows_in:, :]                   # (rows_in, tn)

  # --- GLU hidden layers (value || gate fused into one matmul per layer).
  for i in range(hidden_layers):
    W = glu_refs[2 * i][...]
    bias = glu_refs[2 * i + 1][...]
    vg = jnp.dot(W, h, preferred_element_type=jnp.float32) + bias
    half = W.shape[0] // 2
    gate = 0.5 + 0.5 * jnp.tanh(0.5 * vg[half:, :])              # sigmoid, 1 EUP op
    h = vg[:half, :] * gate

  # --- final linear; out_rows is sublane-padded -> unmasked lane-dense store.
  out = jnp.dot(Wf_ref[...], h, preferred_element_type=jnp.float32) + bf_ref[...]
  out_ref[...] = out.astype(out_ref.dtype)


def _round_up(n, m):
  return ((n + m - 1) // m) * m


# ----------------------------------------------------------------------------
# Wrapper-side parameter folding / padding (all f32, tiny, fetched once).
# ----------------------------------------------------------------------------
def build_kernel_params(params, inputs, outputs, rows_in, out_rows):
  f32 = jnp.float32
  hp = jax.lax.Precision.HIGHEST
  Cn, Ln, Qn = _sh3_decomposition()
  C = jnp.asarray(Cn, f32)
  L = jnp.asarray(Ln, f32)
  Q = jnp.asarray(Qn, f32)

  Wp, bp = params["proj"]                       # (16, 2*inputs), (1, 2*inputs)
  Wab = Wp.T.astype(f32)                        # (2*inputs, 16)
  bab = bp.T.astype(f32)                        # (2*inputs, 1)

  W_lin = jnp.dot(Wab, L, precision=hp)         # (2*inputs, 3)
  W_nl = jnp.dot(Wab, Q, precision=hp)          # (2*inputs, 16)
  b_fold = jnp.dot(Wab, C, precision=hp) + bab  # (2*inputs, 1)

  # Place `a` rows at slab-feature offset 3 and `b` rows at rows_in+3 so the
  # kernel's split at rows_in is sublane-aligned and h = slab*a + b needs no
  # unaligned feature slicing.
  def place_rows(m):
    out = jnp.zeros((2 * rows_in,) + m.shape[1:], f32)
    out = out.at[3:3 + inputs].set(m[:inputs])
    out = out.at[rows_in + 3:rows_in + 3 + inputs].set(m[inputs:])
    return out

  W_lin8 = jnp.zeros((2 * rows_in, 8), f32).at[:, 0:3].set(place_rows(W_lin))
  flat = [W_lin8, place_rows(W_nl), place_rows(b_fold)]

  # Hidden GLU layers: the first MLP layer reads the rows_in-wide h (features
  # at column offset 3); later layers read the hidden-wide h directly.
  # NOTE: hidden that is a multiple of 8 keeps the value/gate split aligned.
  offset, width = 3, rows_in
  for (W, b) in params["glu"]:
    Wt = W.T.astype(f32)                        # (2*hidden, feat_in)
    Wt_p = jnp.zeros((Wt.shape[0], width), f32)
    Wt_p = Wt_p.at[:, offset:offset + Wt.shape[1]].set(Wt)
    flat += [Wt_p, b.T.astype(f32)]
    offset, width = 0, Wt.shape[0] // 2

  Wf, bf = params["final"]
  Wf_t = Wf.T.astype(f32)                       # (outputs, feat_in)
  Wf_p = jnp.zeros((out_rows, width), f32)
  Wf_p = Wf_p.at[:outputs, offset:offset + Wf_t.shape[1]].set(Wf_t)
  bf_p = jnp.zeros((out_rows, 1), f32).at[:outputs].set(bf.T.astype(f32))
  flat += [Wf_p, bf_p]
  return flat


# ----------------------------------------------------------------------------
# Feature-major core (no relayout): slab (rows_in, N) -> (out_rows, N).
# ----------------------------------------------------------------------------
def affine_mlp_forward_fmajor(slab, flat_params, hidden_layers, out_rows, *,
                              tile_n=4096, io_dtype=jnp.float32):
  rows_in, N = slab.shape
  tile = max(128, min(int(tile_n) // 128 * 128, _round_up(N, 128)))
  grid = pl.cdiv(N, tile)          # ragged last block; no wrapper-side padding

  in_specs = [pl.BlockSpec((rows_in, tile), lambda i: (0, i))]
  in_specs += [pl.BlockSpec(p.shape, lambda i: (0, 0)) for p in flat_params]
  out_specs = pl.BlockSpec((out_rows, tile), lambda i: (0, i))

  kernel = functools.partial(_affine_mlp_kernel, hidden_layers, rows_in)

  # VMEM budget: double-buffered streamed tiles + f32 working set + params,
  # with 2x slack; capped by physical capacity minus headroom (v7x: 64 MiB).
  io_item = jnp.dtype(io_dtype).itemsize
  p_bytes = sum(int(np.prod(p.shape)) * 4 for p in flat_params)
  stream = 2 * (rows_in + out_rows) * tile * io_item
  hidden_rows = max((p.shape[0] for p in flat_params[3::2]), default=0)
  work = (16 + 3 * rows_in + 4 * rows_in + 2 * hidden_rows + out_rows) * tile * 4
  need = 2 * (stream + work) + 2 * p_bytes + (2 << 20)
  try:
    cap = int(pltpu.get_tpu_info().vmem_capacity_bytes)
  except Exception:
    cap = 64 << 20
  vmem_limit = int(max(16 << 20, min(need, cap - (8 << 20))))

  return pl.pallas_call(
      kernel,
      out_shape=jax.ShapeDtypeStruct((out_rows, N), io_dtype),
      grid_spec=pltpu.PrefetchScalarGridSpec(
          num_scalar_prefetch=0,
          grid=(grid,),
          in_specs=in_specs,
          out_specs=out_specs,
          scratch_shapes=[pltpu.VMEM((_N_MONO, tile), jnp.float32)],
      ),
      compiler_params=pltpu.CompilerParams(
          dimension_semantics=("parallel",),
          vmem_limit_bytes=vmem_limit),
  )(slab, *flat_params)


# ----------------------------------------------------------------------------
# Point-major convenience wrapper matching the PyTorch interface.
# ----------------------------------------------------------------------------
def affine_mlp_forward(dirs, x, params, hidden_layers, outputs, *,
                       tile_n=4096, io_dtype=jnp.float32):
  """dirs: (N, 3), x: (N, inputs) -> (N, outputs) in io_dtype.

  The single pack+cast+transpose below is the only relayout; producers that
  can supply a feature-major slab should call affine_mlp_forward_fmajor
  directly and keep consuming the feature-major output.
  """
  N, inputs = x.shape
  assert dirs.shape == (N, 3), "expected unit view directions of shape (N, 3)"

  sub = 8 * (4 // jnp.dtype(io_dtype).itemsize)        # 8 rows f32, 16 bf16
  rows_in = _round_up(3 + inputs, sub)
  out_rows = _round_up(outputs, sub)

  # One packed feature-major slab: rows 0..2 = dir, 3..2+inputs = features.
  pad = rows_in - (3 + inputs)
  pieces = [dirs, x] + ([jnp.zeros((N, pad), dirs.dtype)] if pad else [])
  slab = jnp.concatenate(pieces, axis=1).astype(io_dtype).T      # (rows_in, N)

  flat = build_kernel_params(params, inputs, outputs, rows_in, out_rows)
  out_fm = affine_mlp_forward_fmajor(slab, flat, hidden_layers, out_rows,
                                     tile_n=tile_n, io_dtype=io_dtype)
  return out_fm[:outputs, :].T


# ----------------------------------------------------------------------------
# Deterministic nn.Linear-style init (math layout: W (in, out), b (1, out)).
# ----------------------------------------------------------------------------
def _linear_init(key, fan_in, fan_out):
  kw, kb = jax.random.split(key)
  bound = 1.0 / (fan_in ** 0.5)
  W = jax.random.uniform(kw, (fan_in, fan_out), jnp.float32, -bound, bound)
  b = jax.random.uniform(kb, (1, fan_out), jnp.float32, -bound, bound)
  return W, b


def init_params(key, inputs, outputs, hidden, hidden_layers):
  keys = jax.random.split(key, 2 + hidden_layers)
  proj = _linear_init(keys[0], 16, 2 * inputs)        # ProjectSH, no hidden
  glu = []
  feat_in = inputs
  for i in range(hidden_layers):
    glu.append(_linear_init(keys[1 + i], feat_in, 2 * hidden))
    feat_in = hidden
  final = _linear_init(keys[-1], feat_in, outputs)
  return {"proj": proj, "glu": glu, "final": final}


# ----------------------------------------------------------------------------
# Pure-JAX reference (original, un-folded formulation).
# ----------------------------------------------------------------------------
def _mm(a, b):
  return jnp.dot(a, b, precision=jax.lax.Precision.HIGHEST)


def reference(dirs, x, params):
  c = rsh_cart_3_jnp(dirs)                            # (N, 16)
  Wp, bp = params["proj"]
  enc = _mm(c, Wp) + bp                               # (N, 2*inputs)
  inputs = x.shape[1]
  h = x * enc[:, :inputs] + enc[:, inputs:]
  for (W, b) in params["glu"]:
    y = _mm(h, W) + b
    half = y.shape[1] // 2
    h = y[:, :half] * jax.nn.sigmoid(y[:, half:])
  Wf, bf = params["final"]
  return _mm(h, Wf) + bf


if __name__ == "__main__":
  N = 256
  INPUTS, OUTPUTS, HIDDEN, HIDDEN_LAYERS = 8, 4, 32, 2   # proj_hidden_layers=0, sh_degree=3

  key = jax.random.PRNGKey(0)
  k_dir, k_x, k_p = jax.random.split(key, 3)

  dirs = jax.random.normal(k_dir, (N, 3), jnp.float32)
  dirs = dirs / jnp.linalg.norm(dirs, axis=-1, keepdims=True)
  x = jax.random.normal(k_x, (N, INPUTS), jnp.float32)

  params = init_params(k_p, INPUTS, OUTPUTS, HIDDEN, HIDDEN_LAYERS)
  ref = reference(dirs, x, params)

  # f32 streaming path: tight check against the reference.
  fwd_f32 = jax.jit(lambda d, xx, p: affine_mlp_forward(
      d, xx, p, HIDDEN_LAYERS, OUTPUTS, tile_n=4096, io_dtype=jnp.float32))
  out = jax.block_until_ready(fwd_f32(dirs, x, params))
  assert out.shape == (N, OUTPUTS)
  assert jnp.allclose(out, ref, rtol=1e-4, atol=1e-4), "f32 mismatch vs. reference"

  # bf16 streaming path (weights stay f32, accumulation f32): looser check.
  fwd_bf16 = jax.jit(lambda d, xx, p: affine_mlp_forward(
      d, xx, p, HIDDEN_LAYERS, OUTPUTS, tile_n=4096, io_dtype=jnp.bfloat16))
  out_bf16 = jax.block_until_ready(fwd_bf16(dirs, x, params)).astype(jnp.float32)
  assert out_bf16.shape == (N, OUTPUTS)
  assert bool(jnp.all(jnp.isfinite(out_bf16)))
  assert jnp.allclose(out_bf16, ref, rtol=1e-1, atol=1e-1), "bf16 mismatch vs. reference"

  print("KERNEL_OK")
</pallas_src>

<mosaic_0001>
module attributes {stable_mosaic.version = 11 : i64} {
  func.func @_affine_mlp_kernel(%arg0: i32, %arg1: memref<16x256xf32, #tpu.memory_space<vmem>>, %arg2: memref<32x8xf32, #tpu.memory_space<vmem>>, %arg3: memref<32x16xf32, #tpu.memory_space<vmem>>, %arg4: memref<32x1xf32, #tpu.memory_space<vmem>>, %arg5: memref<64x16xf32, #tpu.memory_space<vmem>>, %arg6: memref<64x1xf32, #tpu.memory_space<vmem>>, %arg7: memref<64x32xf32, #tpu.memory_space<vmem>>, %arg8: memref<64x1xf32, #tpu.memory_space<vmem>>, %arg9: memref<8x32xf32, #tpu.memory_space<vmem>>, %arg10: memref<8x1xf32, #tpu.memory_space<vmem>>, %arg11: memref<8x256xf32, #tpu.memory_space<vmem>>, %arg12: memref<16x256xf32, #tpu.memory_space<vmem>>) attributes {dimension_semantics = [#tpu.dimension_semantics<parallel>], iteration_bounds = array<i64: 1>, scalar_prefetch = 0 : i64, scratch_operands = 1 : i64, tpu.core_type = #tpu.core_type<tc>, window_params = [{transform_indices = @transform_0, window_bounds = array<i64: 16, 256>}, {pipeline_mode = #tpu.pipeline_mode<synchronous>, transform_indices = @transform_1, window_bounds = array<i64: 32, 8>}, {pipeline_mode = #tpu.pipeline_mode<synchronous>, transform_indices = @transform_2, window_bounds = array<i64: 32, 16>}, {pipeline_mode = #tpu.pipeline_mode<synchronous>, transform_indices = @transform_3, window_bounds = array<i64: 32, 1>}, {pipeline_mode = #tpu.pipeline_mode<synchronous>, transform_indices = @transform_4, window_bounds = array<i64: 64, 16>}, {pipeline_mode = #tpu.pipeline_mode<synchronous>, transform_indices = @transform_5, window_bounds = array<i64: 64, 1>}, {pipeline_mode = #tpu.pipeline_mode<synchronous>, transform_indices = @transform_6, window_bounds = array<i64: 64, 32>}, {pipeline_mode = #tpu.pipeline_mode<synchronous>, transform_indices = @transform_7, window_bounds = array<i64: 64, 1>}, {pipeline_mode = #tpu.pipeline_mode<synchronous>, transform_indices = @transform_8, window_bounds = array<i64: 8, 32>}, {pipeline_mode = #tpu.pipeline_mode<synchronous>, transform_indices = @transform_9, window_bounds = array<i64: 8, 1>}, {transform_indices = @transform_10, window_bounds = array<i64: 8, 256>}]} {
    %c0 = arith.constant 0 : index
    %c0_0 = arith.constant 0 : index
    %0 = vector.load %arg1[%c0, %c0_0] : memref<16x256xf32, #tpu.memory_space<vmem>>, vector<16x256xf32>
    %1 = vector.extract_strided_slice %0 {offsets = [0, 0], sizes = [3, 256], strides = [1, 1]} : vector<16x256xf32> to vector<3x256xf32>
    %2 = arith.mulf %1, %1 : vector<3x256xf32>
    %c0_1 = arith.constant 0 : index
    %c0_2 = arith.constant 0 : index
    %3 = vector.load %arg12[%c0_1, %c0_2] : memref<16x256xf32, #tpu.memory_space<vmem>>, vector<3x256xf32>
    tpu.vector_store %arg12[%c0_1, %c0_2], %2 {strides = array<i32>} : memref<16x256xf32, #tpu.memory_space<vmem>>, vector<3x256xf32>,
    %4 = arith.mulf %2, %1 : vector<3x256xf32>
    %c3 = arith.constant 3 : index
    %c0_3 = arith.constant 0 : index
    %5 = vector.load %arg12[%c3, %c0_3] : memref<16x256xf32, #tpu.memory_space<vmem>>, vector<3x256xf32>
    tpu.vector_store %arg12[%c3, %c0_3], %4 {strides = array<i32>} : memref<16x256xf32, #tpu.memory_space<vmem>>, vector<3x256xf32>,
    %6 = vector.extract_strided_slice %1 {offsets = [0, 0], sizes = [1, 256], strides = [1, 1]} : vector<3x256xf32> to vector<1x256xf32>
    %7 = vector.extract_strided_slice %1 {offsets = [1, 0], sizes = [1, 256], strides = [1, 1]} : vector<3x256xf32> to vector<1x256xf32>
    %8 = vector.extract_strided_slice %1 {offsets = [2, 0], sizes = [1, 256], strides = [1, 1]} : vector<3x256xf32> to vector<1x256xf32>
    %9 = vector.extract_strided_slice %2 {offsets = [0, 0], sizes = [1, 256], strides = [1, 1]} : vector<3x256xf32> to vector<1x256xf32>
    %10 = vector.extract_strided_slice %2 {offsets = [1, 0], sizes = [1, 256], strides = [1, 1]} : vector<3x256xf32> to vector<1x256xf32>
    %11 = vector.extract_strided_slice %2 {offsets = [2, 0], sizes = [1, 256], strides = [1, 1]} : vector<3x256xf32> to vector<1x256xf32>
    %12 = arith.mulf %6, %7 : vector<1x256xf32>
    %c6 = arith.constant 6 : index
    %c0_4 = arith.constant 0 : index
    %13 = vector.load %arg12[%c6, %c0_4] : memref<16x256xf32, #tpu.memory_space<vmem>>, vector<1x256xf32>
    tpu.vector_store %arg12[%c6, %c0_4], %12 {strides = array<i32>} : memref<16x256xf32, #tpu.memory_space<vmem>>, vector<1x256xf32>,
    %14 = arith.mulf %6, %8 : vector<1x256xf32>
    %c7 = arith.constant 7 : index
    %c0_5 = arith.constant 0 : index
    %15 = vector.load %arg12[%c7, %c0_5] : memref<16x256xf32, #tpu.memory_space<vmem>>, vector<1x256xf32>
    tpu.vector_store %arg12[%c7, %c0_5], %14 {strides = array<i32>} : memref<16x256xf32, #tpu.memory_space<vmem>>, vector<1x256xf32>,
    %16 = arith.mulf %7, %8 : vector<1x256xf32>
    %c8 = arith.constant 8 : index
    %c0_6 = arith.constant 0 : index
    %17 = vector.load %arg12[%c8, %c0_6] : memref<16x256xf32, #tpu.memory_space<vmem>>, vector<1x256xf32>
    tpu.vector_store %arg12[%c8, %c0_6], %16 {strides = array<i32>} : memref<16x256xf32, #tpu.memory_space<vmem>>, vector<1x256xf32>,
    %18 = arith.mulf %9, %7 : vector<1x256xf32>
    %c9 = arith.constant 9 : index
    %c0_7 = arith.constant 0 : index
    %19 = vector.load %arg12[%c9, %c0_7] : memref<16x256xf32, #tpu.memory_space<vmem>>, vector<1x256xf32>
    tpu.vector_store %arg12[%c9, %c0_7], %18 {strides = array<i32>} : memref<16x256xf32, #tpu.memory_space<vmem>>, vector<1x256xf32>,
    %20 = arith.mulf %6, %10 : vector<1x256xf32>
    %c10 = arith.constant 10 : index
    %c0_8 = arith.constant 0 : index
    %21 = vector.load %arg12[%c10, %c0_8] : memref<16x256xf32, #tpu.memory_space<vmem>>, vector<1x256xf32>
    tpu.vector_store %arg12[%c10, %c0_8], %20 {strides = array<i32>} : memref<16x256xf32, #tpu.memory_space<vmem>>, vector<1x256xf32>,
    %22 = arith.mulf %9, %8 : vector<1x256xf32>
    %c11 = arith.constant 11 : index
    %c0_9 = arith.constant 0 : index
    %23 = vector.load %arg12[%c11, %c0_9] : memref<16x256xf32, #tpu.memory_space<vmem>>, vector<1x256xf32>
    tpu.vector_store %arg12[%c11, %c0_9], %22 {strides = array<i32>} : memref<16x256xf32, #tpu.memory_space<vmem>>, vector<1x256xf32>,
    %24 = arith.mulf %10, %8 : vector<1x256xf32>
    %c12 = arith.constant 12 : index
    %c0_10 = arith.constant 0 : index
    %25 = vector.load %arg12[%c12, %c0_10] : memref<16x256xf32, #tpu.memory_space<vmem>>, vector<1x256xf32>
    tpu.vector_store %arg12[%c12, %c0_10], %24 {strides = array<i32>} : memref<16x256xf32, #tpu.memory_space<vmem>>, vector<1x256xf32>,
    %26 = arith.mulf %6, %11 : vector<1x256xf32>
    %c13 = arith.constant 13 : index
    %c0_11 = arith.constant 0 : index
    %27 = vector.load %arg12[%c13, %c0_11] : memref<16x256xf32, #tpu.memory_space<vmem>>, vector<1x256xf32>
    tpu.vector_store %arg12[%c13, %c0_11], %26 {strides = array<i32>} : memref<16x256xf32, #tpu.memory_space<vmem>>, vector<1x256xf32>,
    %28 = arith.mulf %7, %11 : vector<1x256xf32>
    %c14 = arith.constant 14 : index
    %c0_12 = arith.constant 0 : index
    %29 = vector.load %arg12[%c14, %c0_12] : memref<16x256xf32, #tpu.memory_space<vmem>>, vector<1x256xf32>
    tpu.vector_store %arg12[%c14, %c0_12], %28 {strides = array<i32>} : memref<16x256xf32, #tpu.memory_space<vmem>>, vector<1x256xf32>,
    %30 = arith.mulf %12, %8 : vector<1x256xf32>
    %c15 = arith.constant 15 : index
    %c0_13 = arith.constant 0 : index
    %31 = vector.load %arg12[%c15, %c0_13] : memref<16x256xf32, #tpu.memory_space<vmem>>, vector<1x256xf32>
    tpu.vector_store %arg12[%c15, %c0_13], %30 {strides = array<i32>} : memref<16x256xf32, #tpu.memory_space<vmem>>, vector<1x256xf32>,
    %c0_14 = arith.constant 0 : index
    %c0_15 = arith.constant 0 : index
    %32 = vector.load %arg2[%c0_14, %c0_15] : memref<32x8xf32, #tpu.memory_space<vmem>>, vector<32x8xf32>
    %33 = vector.extract_strided_slice %0 {offsets = [0, 0], sizes = [8, 256], strides = [1, 1]} : vector<16x256xf32> to vector<8x256xf32>
    %cst = arith.constant dense<0.000000e+00> : vector<32x256xf32>
    %34 = tpu.matmul %32, %33, %cst {dimension_numbers = #tpu.dot_dimension_numbers<[1], [0], [0], [1], [0, 0, 1, 1], [], []>} : vector<32x8xf32>, vector<8x256xf32>, vector<32x256xf32> -> vector<32x256xf32>
    %c0_16 = arith.constant 0 : index
    %c0_17 = arith.constant 0 : index
    %35 = vector.load %arg3[%c0_16, %c0_17] : memref<32x16xf32, #tpu.memory_space<vmem>>, vector<32x16xf32>
    %c0_18 = arith.constant 0 : index
    %c0_19 = arith.constant 0 : index
    %36 = vector.load %arg12[%c0_18, %c0_19] : memref<16x256xf32, #tpu.memory_space<vmem>>, vector<16x256xf32>
    %cst_20 = arith.constant dense<0.000000e+00> : vector<32x256xf32>
    %37 = tpu.matmul %35, %36, %cst_20 {dimension_numbers = #tpu.dot_dimension_numbers<[1], [0], [0], [1], [0, 0, 1, 1], [], []>} : vector<32x16xf32>, vector<16x256xf32>, vector<32x256xf32> -> vector<32x256xf32>
    %38 = arith.addf %34, %37 : vector<32x256xf32>
    %c0_21 = arith.constant 0 : index
    %c0_22 = arith.constant 0 : index
    %39 = vector.load %arg4[%c0_21, %c0_22] : memref<32x1xf32, #tpu.memory_space<vmem>>, vector<32x1xf32>
    %40 = vector.broadcast %39 : vector<32x1xf32> to vector<32x256xf32>
    %41 = arith.addf %38, %40 : vector<32x256xf32>
    %42 = vector.extract_strided_slice %41 {offsets = [0, 0], sizes = [16, 256], strides = [1, 1]} : vector<32x256xf32> to vector<16x256xf32>
    %43 = arith.mulf %0, %42 : vector<16x256xf32>
    %44 = vector.extract_strided_slice %41 {offsets = [16, 0], sizes = [16, 256], strides = [1, 1]} : vector<32x256xf32> to vector<16x256xf32>
    %45 = arith.addf %43, %44 : vector<16x256xf32>
    %c0_23 = arith.constant 0 : index
    %c0_24 = arith.constant 0 : index
    %46 = vector.load %arg5[%c0_23, %c0_24] : memref<64x16xf32, #tpu.memory_space<vmem>>, vector<64x16xf32>
    %c0_25 = arith.constant 0 : index
    %c0_26 = arith.constant 0 : index
    %47 = vector.load %arg6[%c0_25, %c0_26] : memref<64x1xf32, #tpu.memory_space<vmem>>, vector<64x1xf32>
    %cst_27 = arith.constant dense<0.000000e+00> : vector<64x256xf32>
    %48 = tpu.matmul %46, %45, %cst_27 {dimension_numbers = #tpu.dot_dimension_numbers<[1], [0], [0], [1], [0, 0, 1, 1], [], []>} : vector<64x16xf32>, vector<16x256xf32>, vector<64x256xf32> -> vector<64x256xf32>
    %49 = vector.broadcast %47 : vector<64x1xf32> to vector<64x256xf32>
    %50 = arith.addf %48, %49 : vector<64x256xf32>
    %51 = vector.extract_strided_slice %50 {offsets = [32, 0], sizes = [32, 256], strides = [1, 1]} : vector<64x256xf32> to vector<32x256xf32>
    %cst_28 = arith.constant 5.000000e-01 : f32
    %52 = vector.broadcast %cst_28 : f32 to vector<32x256xf32>
    %53 = arith.mulf %52, %51 : vector<32x256xf32>
    %54 = math.tanh %53 : vector<32x256xf32>
    %cst_29 = arith.constant 5.000000e-01 : f32
    %55 = vector.broadcast %cst_29 : f32 to vector<32x256xf32>
    %56 = arith.mulf %55, %54 : vector<32x256xf32>
    %cst_30 = arith.constant 5.000000e-01 : f32
    %57 = vector.broadcast %cst_30 : f32 to vector<32x256xf32>
    %58 = arith.addf %57, %56 : vector<32x256xf32>
    %59 = vector.extract_strided_slice %50 {offsets = [0, 0], sizes = [32, 256], strides = [1, 1]} : vector<64x256xf32> to vector<32x256xf32>
    %60 = arith.mulf %59, %58 : vector<32x256xf32>
    %c0_31 = arith.constant 0 : index
    %c0_32 = arith.constant 0 : index
    %61 = vector.load %arg7[%c0_31, %c0_32] : memref<64x32xf32, #tpu.memory_space<vmem>>, vector<64x32xf32>
    %c0_33 = arith.constant 0 : index
    %c0_34 = arith.constant 0 : index
    %62 = vector.load %arg8[%c0_33, %c0_34] : memref<64x1xf32, #tpu.memory_space<vmem>>, vector<64x1xf32>
    %cst_35 = arith.constant dense<0.000000e+00> : vector<64x256xf32>
    %63 = tpu.matmul %61, %60, %cst_35 {dimension_numbers = #tpu.dot_dimension_numbers<[1], [0], [0], [1], [0, 0, 1, 1], [], []>} : vector<64x32xf32>, vector<32x256xf32>, vector<64x256xf32> -> vector<64x256xf32>
    %64 = vector.broadcast %62 : vector<64x1xf32> to vector<64x256xf32>
    %65 = arith.addf %63, %64 : vector<64x256xf32>
    %66 = vector.extract_strided_slice %65 {offsets = [32, 0], sizes = [32, 256], strides = [1, 1]} : vector<64x256xf32> to vector<32x256xf32>
    %cst_36 = arith.constant 5.000000e-01 : f32
    %67 = vector.broadcast %cst_36 : f32 to vector<32x256xf32>
    %68 = arith.mulf %67, %66 : vector<32x256xf32>
    %69 = math.tanh %68 : vector<32x256xf32>
    %cst_37 = arith.constant 5.000000e-01 : f32
    %70 = vector.broadcast %cst_37 : f32 to vector<32x256xf32>
    %71 = arith.mulf %70, %69 : vector<32x256xf32>
    %cst_38 = arith.constant 5.000000e-01 : f32
    %72 = vector.broadcast %cst_38 : f32 to vector<32x256xf32>
    %73 = arith.addf %72, %71 : vector<32x256xf32>
    %74 = vector.extract_strided_slice %65 {offsets = [0, 0], sizes = [32, 256], strides = [1, 1]} : vector<64x256xf32> to vector<32x256xf32>
    %75 = arith.mulf %74, %73 : vector<32x256xf32>
    %c0_39 = arith.constant 0 : index
    %c0_40 = arith.constant 0 : index
    %76 = vector.load %arg9[%c0_39, %c0_40] : memref<8x32xf32, #tpu.memory_space<vmem>>, vector<8x32xf32>
    %cst_41 = arith.constant dense<0.000000e+00> : vector<8x256xf32>
    %77 = tpu.matmul %76, %75, %cst_41 {dimension_numbers = #tpu.dot_dimension_numbers<[1], [0], [0], [1], [0, 0, 1, 1], [], []>} : vector<8x32xf32>, vector<32x256xf32>, vector<8x256xf32> -> vector<8x256xf32>
    %c0_42 = arith.constant 0 : index
    %c0_43 = arith.constant 0 : index
    %78 = vector.load %arg10[%c0_42, %c0_43] : memref<8x1xf32, #tpu.memory_space<vmem>>, vector<8x1xf32>
    %79 = vector.broadcast %78 : vector<8x1xf32> to vector<8x256xf32>
    %80 = arith.addf %77, %79 : vector<8x256xf32>
    %c0_44 = arith.constant 0 : index
    %c0_45 = arith.constant 0 : index
    %81 = vector.load %arg11[%c0_44, %c0_45] : memref<8x256xf32, #tpu.memory_space<vmem>>, vector<8x256xf32>
    tpu.vector_store %arg11[%c0_44, %c0_45], %80 {strides = array<i32>} : memref<8x256xf32, #tpu.memory_space<vmem>>, vector<8x256xf32>,
    return
  }
  func.func @transform_0(%arg0: i32) -> (i32, i32) {
    %c0_i32 = arith.constant 0 : i32
    %c0_i32_0 = arith.constant 0 : i32
    return %c0_i32, %arg0 : i32, i32
  }
  func.func @transform_1(%arg0: i32) -> (i32, i32) {
    %c0_i32 = arith.constant 0 : i32
    %c0_i32_0 = arith.constant 0 : i32
    %c0_i32_1 = arith.constant 0 : i32
    return %c0_i32, %c0_i32_0 : i32, i32
  }
  func.func @transform_2(%arg0: i32) -> (i32, i32) {
    %c0_i32 = arith.constant 0 : i32
    %c0_i32_0 = arith.constant 0 : i32
    %c0_i32_1 = arith.constant 0 : i32
    return %c0_i32, %c0_i32_0 : i32, i32
  }
  func.func @transform_3(%arg0: i32) -> (i32, i32) {
    %c0_i32 = arith.constant 0 : i32
    %c0_i32_0 = arith.constant 0 : i32
    %c0_i32_1 = arith.constant 0 : i32
    return %c0_i32, %c0_i32_0 : i32, i32
  }
  func.func @transform_4(%arg0: i32) -> (i32, i32) {
    %c0_i32 = arith.constant 0 : i32
    %c0_i32_0 = arith.constant 0 : i32
    %c0_i32_1 = arith.constant 0 : i32
    return %c0_i32, %c0_i32_0 : i32, i32
  }
  func.func @transform_5(%arg0: i32) -> (i32, i32) {
    %c0_i32 = arith.constant 0 : i32
    %c0_i32_0 = arith.constant 0 : i32
    %c0_i32_1 = arith.constant 0 : i32
    return %c0_i32, %c0_i32_0 : i32, i32
  }
  func.func @transform_6(%arg0: i32) -> (i32, i32) {
    %c0_i32 = arith.constant 0 : i32
    %c0_i32_0 = arith.constant 0 : i32
    %c0_i32_1 = arith.constant 0 : i32
    return %c0_i32, %c0_i32_0 : i32, i32
  }
  func.func @transform_7(%arg0: i32) -> (i32, i32) {
    %c0_i32 = arith.constant 0 : i32
    %c0_i32_0 = arith.constant 0 : i32
    %c0_i32_1 = arith.constant 0 : i32
    return %c0_i32, %c0_i32_0 : i32, i32
  }
  func.func @transform_8(%arg0: i32) -> (i32, i32) {
    %c0_i32 = arith.constant 0 : i32
    %c0_i32_0 = arith.constant 0 : i32
    %c0_i32_1 = arith.constant 0 : i32
    return %c0_i32, %c0_i32_0 : i32, i32
  }
  func.func @transform_9(%arg0: i32) -> (i32, i32) {
    %c0_i32 = arith.constant 0 : i32
    %c0_i32_0 = arith.constant 0 : i32
    %c0_i32_1 = arith.constant 0 : i32
    return %c0_i32, %c0_i32_0 : i32, i32
  }
  func.func @transform_10(%arg0: i32) -> (i32, i32) {
    %c0_i32 = arith.constant 0 : i32
    %c0_i32_0 = arith.constant 0 : i32
    return %c0_i32, %arg0 : i32, i32
  }
}

</mosaic_0001>

<llo_original>
// kernel: _lambda_.1
$region0: #{_lambda_.1}
  #allocation0 [shape = 'u32[]', space=smem, size = 0x4, offset = 0x4, fixed_abs, tag = 'smem constant byte address 0x4 - core index']
  #allocation1 [shape = 'u32[72,128]{1,0:T(1,128)}', space=vmem, size = 0x9000, scoped, tag = 'internal scratch']
  #allocation2 [shape = 'f32[16,256]{1,0:T(8,128)}', space=vmem, size = 0x4000, scoped, tag = 'scratch operand']
  %s0 = inlined_call_operand.vmem [shape: f32[16,256], index: 0, kind: input, shape index: {}]
  %s1 = inlined_call_operand.vmem [shape: f32[32,8], index: 1, kind: input, shape index: {}]
  %s2 = inlined_call_operand.vmem [shape: f32[32,16], index: 2, kind: input, shape index: {}]
  %s3 = inlined_call_operand.vmem [shape: f32[32,1], index: 3, kind: input, shape index: {}]
  %s4 = inlined_call_operand.vmem [shape: f32[64,16], index: 4, kind: input, shape index: {}]
  %s5 = inlined_call_operand.vmem [shape: f32[64,1], index: 5, kind: input, shape index: {}]
  %s6 = inlined_call_operand.vmem [shape: f32[64,32], index: 6, kind: input, shape index: {}]
  %s7 = inlined_call_operand.vmem [shape: f32[64,1], index: 7, kind: input, shape index: {}]
  %s8 = inlined_call_operand.vmem [shape: f32[8,32], index: 8, kind: input, shape index: {}]
  %s9 = inlined_call_operand.vmem [shape: f32[8,1], index: 9, kind: input, shape index: {}]
  %s10 = inlined_call_operand.vmem [shape: f32[8,256], index: 10, kind: output, shape index: {}]
  %s11 = sld [smem:[#allocation0]]
  $region50: #{_lambda_.1} parent=0
    _
  %s13 = ssub.s32 1, %s11
  %s14 = scalar_select 0, %s13, %s11
  // Predicated region
  $region2: #{_lambda_.1} parent=0 // pred_check
    _
  $region3: #{_lambda_.1} parent=0 // pred_check_branch
    %16 = sbr.rel (0) target = $region5
  $region4: #{_lambda_.1} parent=0 // pred_region
    _
  $region5: #{_lambda_.1} parent=0 // pred_fallthru
    _
  // Predicated region
  $region6: #{_lambda_.1} parent=0 // pred_check
    _
  $region7: #{_lambda_.1} parent=0 // pred_check_branch
    %18 = sbr.rel (0) target = $region9
  $region8: #{_lambda_.1} parent=0 // pred_region
    _
  $region9: #{_lambda_.1} parent=0 // pred_fallthru
    _
  // Predicated region
  $region10: #{_lambda_.1} parent=0 // pred_check
    _
  $region11: #{_lambda_.1} parent=0 // pred_check_branch
    %20 = sbr.rel (0) target = $region13
  $region12: #{_lambda_.1} parent=0 // pred_region
    _
  $region13: #{_lambda_.1} parent=0 // pred_fallthru
    _
  // Predicated region
  $region14: #{_lambda_.1} parent=0 // pred_check
    _
  $region15: #{_lambda_.1} parent=0 // pred_check_branch
    %22 = sbr.rel (0) target = $region17
  $region16: #{_lambda_.1} parent=0 // pred_region
    _
  $region17: #{_lambda_.1} parent=0 // pred_fallthru
    _
  // Predicated region
  $region18: #{_lambda_.1} parent=0 // pred_check
    _
  $region19: #{_lambda_.1} parent=0 // pred_check_branch
    %24 = sbr.rel (0) target = $region21
  $region20: #{_lambda_.1} parent=0 // pred_region
    _
  $region21: #{_lambda_.1} parent=0 // pred_fallthru
    _
  // Predicated region
  $region22: #{_lambda_.1} parent=0 // pred_check
    _
  $region23: #{_lambda_.1} parent=0 // pred_check_branch
    %26 = sbr.rel (0) target = $region25
  $region24: #{_lambda_.1} parent=0 // pred_region
    _
  $region25: #{_lambda_.1} parent=0 // pred_fallthru
    _
  // Predicated region
  $region26: #{_lambda_.1} parent=0 // pred_check
    _
  $region27: #{_lambda_.1} parent=0 // pred_check_branch
    %28 = sbr.rel (0) target = $region29
  $region28: #{_lambda_.1} parent=0 // pred_region
    _
  $region29: #{_lambda_.1} parent=0 // pred_fallthru
    _
  // Predicated region
  $region30: #{_lambda_.1} parent=0 // pred_check
    _
  $region31: #{_lambda_.1} parent=0 // pred_check_branch
    %30 = sbr.rel (0) target = $region33
  $region32: #{_lambda_.1} parent=0 // pred_region
    _
  $region33: #{_lambda_.1} parent=0 // pred_fallthru
    _
  // Predicated region
  $region34: #{_lambda_.1} parent=0 // pred_check
    _
  $region35: #{_lambda_.1} parent=0 // pred_check_branch
    %32 = sbr.rel (0) target = $region37
  $region36: #{_lambda_.1} parent=0 // pred_region
    _
  $region37: #{_lambda_.1} parent=0 // pred_fallthru
    _
  // Predicated region
  $region38: #{_lambda_.1} parent=0 // pred_check
    _
  $region39: #{_lambda_.1} parent=0 // pred_check_branch
    %34 = sbr.rel (0) target = $region41
  $region40: #{_lambda_.1} parent=0 // pred_region
    _
  $region41: #{_lambda_.1} parent=0 // pred_fallthru
    _
  %v35 = vld [vmem:[%s0] sm:$0xff]
  %v36 = vld [vmem:[%s0 + $0x8] sm:$0xff]
  %v37 = vld [vmem:[%s0 + $0x10] sm:$0xff]
  %v38 = vld [vmem:[%s0 + $0x18] sm:$0xff]
  %v39 = vmul.f32 %v35, %v35
  %v40 = vmul.f32 %v36, %v36
  %41 = vst [vmem:[#allocation2] sm:$0x7] %v39
  %42 = vst [vmem:[#allocation2 + $0x8] sm:$0x7] %v40
  %v43 = vmul.f32 %v39, %v35
  %v44 = vmul.f32 %v40, %v36
  %v47 = vrot.slane %v43, 5
  %v48 = vrot.slane %v44, 5
  %51 = vst [vmem:[#allocation2] sm:$0x38] %v47
  %52 = vst [vmem:[#allocation2 + $0x8] sm:$0x38] %v48
  %v55 = vrot.slane %v35, 1
  %v56 = vrot.slane %v36, 1
  %v59 = vmul.f32 %v35, %v55
  %v60 = vmul.f32 %v36, %v56
  %v63 = vrot.slane %v60, 7
  %vm64 = vcmask 1040384
  %v65 = vsel %vm64, %v59, %v63
  %v67 = vlaneseq
  %vm68 = vcmp.ge.s32.totalorder %v67, 0
  %vm69 = vcmp.lt.s32.totalorder %v67, 256
  %vm70 = vmand %vm68, %vm69
  %s71 = scalar_lea.vmem [#allocation2], 6
  %72 = vst.msk [vmem:[%s71] ss:$8 sm:$0x3] %vm70, %v65
  %73 = vst.msk [vmem:[%s71] ss:$8 sm:$0x0] %vm70, %v65
  %v74 = vrot.slane %v35, 2
  %v75 = vrot.slane %v36, 2
  %v78 = vmul.f32 %v35, %v74
  %v79 = vmul.f32 %v36, %v75
  %v82 = vrot.slane %v79, 7
  %v83 = vsel %vm64, %v78, %v82
  %s85 = scalar_lea.vmem [#allocation2], 7
  %86 = vst.msk [vmem:[%s85] ss:$8 sm:$0x3] %vm70, %v83
  %87 = vst.msk [vmem:[%s85] ss:$8 sm:$0x0] %vm70, %v83
  %88 = vst [vmem:[#allocation1] sm:$0xff] %v59
  %89 = vst [vmem:[#allocation1 + $0x9] sm:$0xff] %v60
  %s90 = scalar_lea.vmem [#allocation1], 1
  %v91 = vld [vmem:[%s90] ss:$9 sm:$0xff]
  %s93 = scalar_lea.vmem [#allocation2], 16
  %94 = vst.msk [vmem:[%s93] ss:$8 sm:$0x3] %vm70, %v91
  %95 = vst.msk [vmem:[%s93] ss:$8 sm:$0x0] %vm70, %v91
  %v96 = vmul.f32 %v39, %v55
  %v97 = vmul.f32 %v40, %v56
  %v100 = vrot.slane %v97, 7
  %v101 = vsel %vm64, %v96, %v100
  %s103 = scalar_lea.vmem [#allocation2], 17
  %104 = vst.msk [vmem:[%s103] ss:$8 sm:$0x3] %vm70, %v101
  %105 = vst.msk [vmem:[%s103] ss:$8 sm:$0x0] %vm70, %v101
  %v108 = vrot.slane %v39, 1
  %v109 = vrot.slane %v40, 1
  %v112 = vmul.f32 %v35, %v108
  %v113 = vmul.f32 %v36, %v109
  %v116 = vrot.slane %v113, 7
  %v117 = vsel %vm64, %v112, %v116
  %s119 = scalar_lea.vmem [#allocation2], 18
  %120 = vst.msk [vmem:[%s119] ss:$8 sm:$0x3] %vm70, %v117
  %121 = vst.msk [vmem:[%s119] ss:$8 sm:$0x0] %vm70, %v117
  %v122 = vmul.f32 %v39, %v74
  %v123 = vmul.f32 %v40, %v75
  %v126 = vrot.slane %v123, 7
  %v127 = vsel %vm64, %v122, %v126
  %s129 = scalar_lea.vmem [#allocation2], 19
  %130 = vst.msk [vmem:[%s129] ss:$8 sm:$0x3] %vm70, %v127
  %131 = vst.msk [vmem:[%s129] ss:$8 sm:$0x0] %vm70, %v127
  %132 = vst [vmem:[#allocation1] sm:$0xff] %v96
  %133 = vst [vmem:[#allocation1 + $0x9] sm:$0xff] %v97
  %s134 = scalar_lea.vmem [#allocation1], 1
  %v135 = vld [vmem:[%s134] ss:$9 sm:$0xff]
  %s137 = scalar_lea.vmem [#allocation2], 20
  %138 = vst.msk [vmem:[%s137] ss:$8 sm:$0x3] %vm70, %v135
  %139 = vst.msk [vmem:[%s137] ss:$8 sm:$0x0] %vm70, %v135
  %v140 = vrot.slane %v39, 2
  %v141 = vrot.slane %v40, 2
  %v144 = vmul.f32 %v35, %v140
  %v145 = vmul.f32 %v36, %v141
  %v148 = vrot.slane %v145, 7
  %v149 = vsel %vm64, %v144, %v148
  %s151 = scalar_lea.vmem [#allocation2], 21
  %152 = vst.msk [vmem:[%s151] ss:$8 sm:$0x3] %vm70, %v149
  %153 = vst.msk [vmem:[%s151] ss:$8 sm:$0x0] %vm70, %v149
  %154 = vst [vmem:[#allocation1] sm:$0xff] %v112
  %155 = vst [vmem:[#allocation1 + $0x9] sm:$0xff] %v113
  %s156 = scalar_lea.vmem [#allocation1], 1
  %v157 = vld [vmem:[%s156] ss:$9 sm:$0xff]
  %s159 = scalar_lea.vmem [#allocation2], 22
  %160 = vst.msk [vmem:[%s159] ss:$8 sm:$0x3] %vm70, %v157
  %161 = vst.msk [vmem:[%s159] ss:$8 sm:$0x0] %vm70, %v157
  %v162 = vmul.f32 %v59, %v74
  %v163 = vmul.f32 %v60, %v75
  %v166 = vrot.slane %v163, 7
  %v167 = vsel %vm64, %v162, %v166
  %s169 = scalar_lea.vmem [#allocation2], 23
  %170 = vst.msk [vmem:[%s169] ss:$8 sm:$0x3] %vm70, %v167
  %171 = vst.msk [vmem:[%s169] ss:$8 sm:$0x0] %vm70, %v167
  %v172 = vld [vmem:[%s1] sm:$0xff]
  %v173 = vld [vmem:[%s1 + $0x8] sm:$0xff]
  %v174 = vld [vmem:[%s1 + $0x10] sm:$0xff]
  %v175 = vld [vmem:[%s1 + $0x18] sm:$0xff]
  %v176 = vld [vmem:[%s2] sm:$0xff]
  %v177 = vld [vmem:[%s2 + $0x8] sm:$0xff]
  %v178 = vld [vmem:[%s2 + $0x10] sm:$0xff]
  %v179 = vld [vmem:[%s2 + $0x18] sm:$0xff]
  %v180 = vld [vmem:[#allocation2] sm:$0xff]
  %v181 = vld [vmem:[#allocation2 + $0x8] sm:$0xff]
  %v182 = vld [vmem:[#allocation2 + $0x10] sm:$0xff]
  %v183 = vld [vmem:[#allocation2 + $0x18] sm:$0xff]
  %vm184 = vcmask 130048
  %v186 = vsel %vm184, %v176, 0
  %v189 = vsel %vm184, %v177, 0
  %v192 = vsel %vm184, %v178, 0
  %v195 = vsel %vm184, %v179, 0
  %197 = vmatpush.msra.mxu0 0.0
  %198 = vmatpush.msra.mxu0 0.0
  %199 = vmatpush.msra.mxu0 0.0
  %200 = vmatpush.msra.mxu0 0.0
  %201 = vmatpush.msra.mxu0 0.0
  %202 = vmatpush.msra.mxu0 0.0
  %203 = vmatpush.msra.mxu0 0.0
  %204 = vmatpush.msra.mxu0 0.0
  %205 = vmatpush.msra.mxu0 0.0
  %206 = vmatpush.msra.mxu0 0.0
  %207 = vmatpush.msra.mxu0 0.0
  %208 = vmatpush.msra.mxu0 0.0
  %209 = vmatpush.msra.mxu0 0.0
  %210 = vmatpush.msra.mxu0 0.0
  %211 = vmatpush.msra.mxu0 %v182
  %212 = vmatpush.msra.mxu0 %v180
  %213 = vmatmul.f32.gmra.mxu0 %v186
  %v214 = vpop.f32.mrf.mxu0
  %v215 = vadd.f32 0.0, %v214
  %216 = vmatmul.f32.gmra.mxu0 %v189
  %v217 = vpop.f32.mrf.mxu0
  %v218 = vadd.f32 0.0, %v217
  %219 = vmatmul.f32.gmra.mxu0 %v192
  %v220 = vpop.f32.mrf.mxu0
  %v221 = vadd.f32 0.0, %v220
  %222 = vmatmul.f32.gmra.mxu0 %v195
  %v223 = vpop.f32.mrf.mxu0
  %v224 = vadd.f32 0.0, %v223
  %225 = vdwg.mxu0
  %226 = vmatpush.msra.mxu0 0.0
  %227 = vmatpush.msra.mxu0 0.0
  %228 = vmatpush.msra.mxu0 0.0
  %229 = vmatpush.msra.mxu0 0.0
  %230 = vmatpush.msra.mxu0 0.0
  %231 = vmatpush.msra.mxu0 0.0
  %232 = vmatpush.msra.mxu0 0.0
  %233 = vmatpush.msra.mxu0 0.0
  %234 = vmatpush.msra.mxu0 0.0
  %235 = vmatpush.msra.mxu0 0.0
  %236 = vmatpush.msra.mxu0 0.0
  %237 = vmatpush.msra.mxu0 0.0
  %238 = vmatpush.msra.mxu0 0.0
  %239 = vmatpush.msra.mxu0 0.0
  %240 = vmatpush.msra.mxu0 %v183
  %241 = vmatpush.msra.mxu0 %v181
  %242 = vmatmul.f32.gmra.mxu0 %v186
  %v243 = vpop.f32.mrf.mxu0
  %v244 = vadd.f32 0.0, %v243
  %245 = vmatmul.f32.gmra.mxu0 %v189
  %v246 = vpop.f32.mrf.mxu0
  %v247 = vadd.f32 0.0, %v246
  %248 = vmatmul.f32.gmra.mxu0 %v192
  %v249 = vpop.f32.mrf.mxu0
  %v250 = vadd.f32 0.0, %v249
  %251 = vmatmul.f32.gmra.mxu0 %v195
  %v252 = vpop.f32.mrf.mxu0
  %v253 = vadd.f32 0.0, %v252
  %254 = vdwg.mxu0
  %vm255 = vcmask 64512
  %v257 = vsel %vm255, %v172, 0
  %v260 = vsel %vm255, %v173, 0
  %v263 = vsel %vm255, %v174, 0
  %v266 = vsel %vm255, %v175, 0
  %268 = vmatpush.msra.mxu0 0.0
  %269 = vmatpush.msra.mxu0 0.0
  %270 = vmatpush.msra.mxu0 0.0
  %271 = vmatpush.msra.mxu0 0.0
  %272 = vmatpush.msra.mxu0 0.0
  %273 = vmatpush.msra.mxu0 0.0
  %274 = vmatpush.msra.mxu0 0.0
  %275 = vmatpush.msra.mxu0 0.0
  %276 = vmatpush.msra.mxu0 0.0
  %277 = vmatpush.msra.mxu0 0.0
  %278 = vmatpush.msra.mxu0 0.0
  %279 = vmatpush.msra.mxu0 0.0
  %280 = vmatpush.msra.mxu0 0.0
  %281 = vmatpush.msra.mxu0 0.0
  %282 = vmatpush.msra.mxu0 0.0
  %283 = vmatpush.msra.mxu0 %v35
  %284 = vmatmul.f32.gmra.mxu0 %v257
  %v285 = vpop.f32.mrf.mxu0
  %v286 = vadd.f32 %v215, %v285
  %287 = vmatmul.f32.gmra.mxu0 %v260
  %v288 = vpop.f32.mrf.mxu0
  %v289 = vadd.f32 %v218, %v288
  %290 = vmatmul.f32.gmra.mxu0 %v263
  %v291 = vpop.f32.mrf.mxu0
  %v292 = vadd.f32 %v221, %v291
  %293 = vmatmul.f32.gmra.mxu0 %v266
  %v294 = vpop.f32.mrf.mxu0
  %v295 = vadd.f32 %v224, %v294
  %296 = vdwg.mxu0
  %297 = vmatpush.msra.mxu0 0.0
  %298 = vmatpush.msra.mxu0 0.0
  %299 = vmatpush.msra.mxu0 0.0
  %300 = vmatpush.msra.mxu0 0.0
  %301 = vmatpush.msra.mxu0 0.0
  %302 = vmatpush.msra.mxu0 0.0
  %303 = vmatpush.msra.mxu0 0.0
  %304 = vmatpush.msra.mxu0 0.0
  %305 = vmatpush.msra.mxu0 0.0
  %306 = vmatpush.msra.mxu0 0.0
  %307 = vmatpush.msra.mxu0 0.0
  %308 = vmatpush.msra.mxu0 0.0
  %309 = vmatpush.msra.mxu0 0.0
  %310 = vmatpush.msra.mxu0 0.0
  %311 = vmatpush.msra.mxu0 0.0
  %312 = vmatpush.msra.mxu0 %v36
  %313 = vmatmul.f32.gmra.mxu0 %v257
  %v314 = vpop.f32.mrf.mxu0
  %v315 = vadd.f32 %v244, %v314
  %316 = vmatmul.f32.gmra.mxu0 %v260
  %v317 = vpop.f32.mrf.mxu0
  %v318 = vadd.f32 %v247, %v317
  %319 = vmatmul.f32.gmra.mxu0 %v263
  %v320 = vpop.f32.mrf.mxu0
  %v321 = vadd.f32 %v250, %v320
  %322 = vmatmul.f32.gmra.mxu0 %v266
  %v323 = vpop.f32.mrf.mxu0
  %v324 = vadd.f32 %v253, %v323
  %325 = vdwg.mxu0
  %v326 = vld [vmem:[%s3] sm:$0xff]
  %v327 = vld [vmem:[%s3 + $0x8] sm:$0xff]
  %v328 = vld [vmem:[%s3 + $0x10] sm:$0xff]
  %v329 = vld [vmem:[%s3 + $0x18] sm:$0xff]
  %331 = vset.pattern.permute.xlu0 0
  %332 = vperm.xlu0 %331, %v326
  %v333 = vpop.permute.xlu0 %332
  %336 = vset.pattern.permute.xlu0 0
  %337 = vperm.xlu0 %336, %v327
  %v338 = vpop.permute.xlu0 %337
  %341 = vset.pattern.permute.xlu0 0
  %342 = vperm.xlu0 %341, %v328
  %v343 = vpop.permute.xlu0 %342
  %346 = vset.pattern.permute.xlu0 0
  %347 = vperm.xlu0 %346, %v329
  %v348 = vpop.permute.xlu0 %347
  %v350 = vadd.f32 %v286, %v333
  %v351 = vadd.f32 %v315, %v333
  %v352 = vadd.f32 %v289, %v338
  %v353 = vadd.f32 %v318, %v338
  %v354 = vadd.f32 %v292, %v343
  %v355 = vadd.f32 %v321, %v343
  %v356 = vadd.f32 %v295, %v348
  %v357 = vadd.f32 %v324, %v348
  %v358 = vmul.f32 %v35, %v350
  %v359 = vmul.f32 %v36, %v351
  %v360 = vmul.f32 %v37, %v352
  %v361 = vmul.f32 %v38, %v353
  %v362 = vadd.f32 %v358, %v354
  %v363 = vadd.f32 %v359, %v355
  %v364 = vadd.f32 %v360, %v356
  %v365 = vadd.f32 %v361, %v357
  %v366 = vld [vmem:[%s4] sm:$0xff]
  %v367 = vld [vmem:[%s4 + $0x8] sm:$0xff]
  %v368 = vld [vmem:[%s4 + $0x10] sm:$0xff]
  %v369 = vld [vmem:[%s4 + $0x18] sm:$0xff]
  %v370 = vld [vmem:[%s4 + $0x20] sm:$0xff]
  %v371 = vld [vmem:[%s4 + $0x28] sm:$0xff]
  %v372 = vld [vmem:[%s4 + $0x30] sm:$0xff]
  %v373 = vld [vmem:[%s4 + $0x38] sm:$0xff]
  %v374 = vld [vmem:[%s5] sm:$0xff]
  %v375 = vld [vmem:[%s5 + $0x8] sm:$0xff]
  %v376 = vld [vmem:[%s5 + $0x10] sm:$0xff]
  %v377 = vld [vmem:[%s5 + $0x18] sm:$0xff]
  %v378 = vld [vmem:[%s5 + $0x20] sm:$0xff]
  %v379 = vld [vmem:[%s5 + $0x28] sm:$0xff]
  %v380 = vld [vmem:[%s5 + $0x30] sm:$0xff]
  %v381 = vld [vmem:[%s5 + $0x38] sm:$0xff]
  %383 = vset.pattern.permute.xlu0 0
  %384 = vperm.xlu0 %383, %v374
  %v385 = vpop.permute.xlu0 %384
  %388 = vset.pattern.permute.xlu0 0
  %389 = vperm.xlu0 %388, %v375
  %v390 = vpop.permute.xlu0 %389
  %393 = vset.pattern.permute.xlu0 0
  %394 = vperm.xlu0 %393, %v376
  %v395 = vpop.permute.xlu0 %394
  %398 = vset.pattern.permute.xlu0 0
  %399 = vperm.xlu0 %398, %v377
  %v400 = vpop.permute.xlu0 %399
  %403 = vset.pattern.permute.xlu0 0
  %404 = vperm.xlu0 %403, %v378
  %v405 = vpop.permute.xlu0 %404
  %408 = vset.pattern.permute.xlu0 0
  %409 = vperm.xlu0 %408, %v379
  %v410 = vpop.permute.xlu0 %409
  %413 = vset.pattern.permute.xlu0 0
  %414 = vperm.xlu0 %413, %v380
  %v415 = vpop.permute.xlu0 %414
  %418 = vset.pattern.permute.xlu0 0
  %419 = vperm.xlu0 %418, %v381
  %v420 = vpop.permute.xlu0 %419
  %v423 = vsel %vm184, %v366, 0
  %v426 = vsel %vm184, %v367, 0
  %v429 = vsel %vm184, %v368, 0
  %v432 = vsel %vm184, %v369, 0
  %v435 = vsel %vm184, %v370, 0
  %v438 = vsel %vm184, %v371, 0
  %v441 = vsel %vm184, %v372, 0
  %v444 = vsel %vm184, %v373, 0
  %446 = vmatpush.msra.mxu0 0.0
  %447 = vmatpush.msra.mxu0 0.0
  %448 = vmatpush.msra.mxu0 0.0
  %449 = vmatpush.msra.mxu0 0.0
  %450 = vmatpush.msra.mxu0 0.0
  %451 = vmatpush.msra.mxu0 0.0
  %452 = vmatpush.msra.mxu0 0.0
  %453 = vmatpush.msra.mxu0 0.0
  %454 = vmatpush.msra.mxu0 0.0
  %455 = vmatpush.msra.mxu0 0.0
  %456 = vmatpush.msra.mxu0 0.0
  %457 = vmatpush.msra.mxu0 0.0
  %458 = vmatpush.msra.mxu0 0.0
  %459 = vmatpush.msra.mxu0 0.0
  %460 = vmatpush.msra.mxu0 %v364
  %461 = vmatpush.msra.mxu0 %v362
  %462 = vmatmul.f32.gmra.mxu0 %v423
  %v463 = vpop.f32.mrf.mxu0
  %v464 = vadd.f32 %v385, %v463
  %465 = vmatmul.f32.gmra.mxu0 %v426
  %v466 = vpop.f32.mrf.mxu0
  %v467 = vadd.f32 %v390, %v466
  %468 = vmatmul.f32.gmra.mxu0 %v429
  %v469 = vpop.f32.mrf.mxu0
  %v470 = vadd.f32 %v395, %v469
  %471 = vmatmul.f32.gmra.mxu0 %v432
  %v472 = vpop.f32.mrf.mxu0
  %v473 = vadd.f32 %v400, %v472
  %474 = vmatmul.f32.gmra.mxu0 %v435
  %v475 = vpop.f32.mrf.mxu0
  %v476 = vadd.f32 %v405, %v475
  %477 = vmatmul.f32.gmra.mxu0 %v438
  %v478 = vpop.f32.mrf.mxu0
  %v479 = vadd.f32 %v410, %v478
  %480 = vmatmul.f32.gmra.mxu0 %v441
  %v481 = vpop.f32.mrf.mxu0
  %v482 = vadd.f32 %v415, %v481
  %483 = vmatmul.f32.gmra.mxu0 %v444
  %v484 = vpop.f32.mrf.mxu0
  %v485 = vadd.f32 %v420, %v484
  %486 = vdwg.mxu0
  %487 = vmatpush.msra.mxu0 0.0
  %488 = vmatpush.msra.mxu0 0.0
  %489 = vmatpush.msra.mxu0 0.0
  %490 = vmatpush.msra.mxu0 0.0
  %491 = vmatpush.msra.mxu0 0.0
  %492 = vmatpush.msra.mxu0 0.0
  %493 = vmatpush.msra.mxu0 0.0
  %494 = vmatpush.msra.mxu0 0.0
  %495 = vmatpush.msra.mxu0 0.0
  %496 = vmatpush.msra.mxu0 0.0
  %497 = vmatpush.msra.mxu0 0.0
  %498 = vmatpush.msra.mxu0 0.0
  %499 = vmatpush.msra.mxu0 0.0
  %500 = vmatpush.msra.mxu0 0.0
  %501 = vmatpush.msra.mxu0 %v365
  %502 = vmatpush.msra.mxu0 %v363
  %503 = vmatmul.f32.gmra.mxu0 %v423
  %v504 = vpop.f32.mrf.mxu0
  %v505 = vadd.f32 %v385, %v504
  %506 = vmatmul.f32.gmra.mxu0 %v426
  %v507 = vpop.f32.mrf.mxu0
  %v508 = vadd.f32 %v390, %v507
  %509 = vmatmul.f32.gmra.mxu0 %v429
  %v510 = vpop.f32.mrf.mxu0
  %v511 = vadd.f32 %v395, %v510
  %512 = vmatmul.f32.gmra.mxu0 %v432
  %v513 = vpop.f32.mrf.mxu0
  %v514 = vadd.f32 %v400, %v513
  %515 = vmatmul.f32.gmra.mxu0 %v435
  %v516 = vpop.f32.mrf.mxu0
  %v517 = vadd.f32 %v405, %v516
  %518 = vmatmul.f32.gmra.mxu0 %v438
  %v519 = vpop.f32.mrf.mxu0
  %v520 = vadd.f32 %v410, %v519
  %521 = vmatmul.f32.gmra.mxu0 %v441
  %v522 = vpop.f32.mrf.mxu0
  %v523 = vadd.f32 %v415, %v522
  %524 = vmatmul.f32.gmra.mxu0 %v444
  %v525 = vpop.f32.mrf.mxu0
  %v526 = vadd.f32 %v420, %v525
  %527 = vdwg.mxu0
  %v528 = vmul.f32 %v476, 0.5
  %v529 = vmul.f32 %v517, 0.5
  %v530 = vmul.f32 %v479, 0.5
  %v531 = vmul.f32 %v520, 0.5
  %v532 = vmul.f32 %v482, 0.5
  %v533 = vmul.f32 %v523, 0.5
  %v534 = vmul.f32 %v485, 0.5
  %v535 = vmul.f32 %v526, 0.5
  %v536 = vtanh.pop %v528
  %v537 = vtanh.pop %v529
  %v538 = vtanh.pop %v530
  %v539 = vtanh.pop %v531
  %v540 = vtanh.pop %v532
  %v541 = vtanh.pop %v533
  %v542 = vtanh.pop %v534
  %v543 = vtanh.pop %v535
  %v544 = vmul.f32 %v536, 0.5
  %v545 = vmul.f32 %v537, 0.5
  %v546 = vmul.f32 %v538, 0.5
  %v547 = vmul.f32 %v539, 0.5
  %v548 = vmul.f32 %v540, 0.5
  %v549 = vmul.f32 %v541, 0.5
  %v550 = vmul.f32 %v542, 0.5
  %v551 = vmul.f32 %v543, 0.5
  %v552 = vadd.f32 %v544, 0.5
  %v553 = vadd.f32 %v545, 0.5
  %v554 = vadd.f32 %v546, 0.5
  %v555 = vadd.f32 %v547, 0.5
  %v556 = vadd.f32 %v548, 0.5
  %v557 = vadd.f32 %v549, 0.5
  %v558 = vadd.f32 %v550, 0.5
  %v559 = vadd.f32 %v551, 0.5
  %v560 = vmul.f32 %v464, %v552
  %v561 = vmul.f32 %v505, %v553
  %v562 = vmul.f32 %v467, %v554
  %v563 = vmul.f32 %v508, %v555
  %v564 = vmul.f32 %v470, %v556
  %v565 = vmul.f32 %v511, %v557
  %v566 = vmul.f32 %v473, %v558
  %v567 = vmul.f32 %v514, %v559
  %v568 = vld [vmem:[%s6] sm:$0xff]
  %v569 = vld [vmem:[%s6 + $0x8] sm:$0xff]
  %v570 = vld [vmem:[%s6 + $0x10] sm:$0xff]
  %v571 = vld [vmem:[%s6 + $0x18] sm:$0xff]
  %v572 = vld [vmem:[%s6 + $0x20] sm:$0xff]
  %v573 = vld [vmem:[%s6 + $0x28] sm:$0xff]
  %v574 = vld [vmem:[%s6 + $0x30] sm:$0xff]
  %v575 = vld [vmem:[%s6 + $0x38] sm:$0xff]
  %v576 = vld [vmem:[%s7] sm:$0xff]
  %v577 = vld [vmem:[%s7 + $0x8] sm:$0xff]
  %v578 = vld [vmem:[%s7 + $0x10] sm:$0xff]
  %v579 = vld [vmem:[%s7 + $0x18] sm:$0xff]
  %v580 = vld [vmem:[%s7 + $0x20] sm:$0xff]
  %v581 = vld [vmem:[%s7 + $0x28] sm:$0xff]
  %v582 = vld [vmem:[%s7 + $0x30] sm:$0xff]
  %v583 = vld [vmem:[%s7 + $0x38] sm:$0xff]
  %585 = vset.pattern.permute.xlu0 0
  %586 = vperm.xlu0 %585, %v576
  %v587 = vpop.permute.xlu0 %586
  %590 = vset.pattern.permute.xlu0 0
  %591 = vperm.xlu0 %590, %v577
  %v592 = vpop.permute.xlu0 %591
  %595 = vset.pattern.permute.xlu0 0
  %596 = vperm.xlu0 %595, %v578
  %v597 = vpop.permute.xlu0 %596
  %600 = vset.pattern.permute.xlu0 0
  %601 = vperm.xlu0 %600, %v579
  %v602 = vpop.permute.xlu0 %601
  %605 = vset.pattern.permute.xlu0 0
  %606 = vperm.xlu0 %605, %v580
  %v607 = vpop.permute.xlu0 %606
  %610 = vset.pattern.permute.xlu0 0
  %611 = vperm.xlu0 %610, %v581
  %v612 = vpop.permute.xlu0 %611
  %615 = vset.pattern.permute.xlu0 0
  %616 = vperm.xlu0 %615, %v582
  %v617 = vpop.permute.xlu0 %616
  %620 = vset.pattern.permute.xlu0 0
  %621 = vperm.xlu0 %620, %v583
  %v622 = vpop.permute.xlu0 %621
  %vm624 = vcmask 261120
  %v626 = vsel %vm624, %v568, 0
  %v629 = vsel %vm624, %v569, 0
  %v632 = vsel %vm624, %v570, 0
  %v635 = vsel %vm624, %v571, 0
  %v638 = vsel %vm624, %v572, 0
  %v641 = vsel %vm624, %v573, 0
  %v644 = vsel %vm624, %v574, 0
  %v647 = vsel %vm624, %v575, 0
  %649 = vmatpush.msra.mxu0 0.0
  %650 = vmatpush.msra.mxu0 0.0
  %651 = vmatpush.msra.mxu0 0.0
  %652 = vmatpush.msra.mxu0 0.0
  %653 = vmatpush.msra.mxu0 0.0
  %654 = vmatpush.msra.mxu0 0.0
  %655 = vmatpush.msra.mxu0 0.0
  %656 = vmatpush.msra.mxu0 0.0
  %657 = vmatpush.msra.mxu0 0.0
  %658 = vmatpush.msra.mxu0 0.0
  %659 = vmatpush.msra.mxu0 0.0
  %660 = vmatpush.msra.mxu0 0.0
  %661 = vmatpush.msra.mxu0 %v566
  %662 = vmatpush.msra.mxu0 %v564
  %663 = vmatpush.msra.mxu0 %v562
  %664 = vmatpush.msra.mxu0 %v560
  %665 = vmatmul.f32.gmra.mxu0 %v626
  %v666 = vpop.f32.mrf.mxu0
  %v667 = vadd.f32 %v587, %v666
  %668 = vmatmul.f32.gmra.mxu0 %v629
  %v669 = vpop.f32.mrf.mxu0
  %v670 = vadd.f32 %v592, %v669
  %671 = vmatmul.f32.gmra.mxu0 %v632
  %v672 = vpop.f32.mrf.mxu0
  %v673 = vadd.f32 %v597, %v672
  %674 = vmatmul.f32.gmra.mxu0 %v635
  %v675 = vpop.f32.mrf.mxu0
  %v676 = vadd.f32 %v602, %v675
  %677 = vmatmul.f32.gmra.mxu0 %v638
  %v678 = vpop.f32.mrf.mxu0
  %v679 = vadd.f32 %v607, %v678
  %680 = vmatmul.f32.gmra.mxu0 %v641
  %v681 = vpop.f32.mrf.mxu0
  %v682 = vadd.f32 %v612, %v681
  %683 = vmatmul.f32.gmra.mxu0 %v644
  %v684 = vpop.f32.mrf.mxu0
  %v685 = vadd.f32 %v617, %v684
  %686 = vmatmul.f32.gmra.mxu0 %v647
  %v687 = vpop.f32.mrf.mxu0
  %v688 = vadd.f32 %v622, %v687
  %689 = vdwg.mxu0
  %690 = vmatpush.msra.mxu0 0.0
  %691 = vmatpush.msra.mxu0 0.0
  %692 = vmatpush.msra.mxu0 0.0
  %693 = vmatpush.msra.mxu0 0.0
  %694 = vmatpush.msra.mxu0 0.0
  %695 = vmatpush.msra.mxu0 0.0
  %696 = vmatpush.msra.mxu0 0.0
  %697 = vmatpush.msra.mxu0 0.0
  %698 = vmatpush.msra.mxu0 0.0
  %699 = vmatpush.msra.mxu0 0.0
  %700 = vmatpush.msra.mxu0 0.0
  %701 = vmatpush.msra.mxu0 0.0
  %702 = vmatpush.msra.mxu0 %v567
  %703 = vmatpush.msra.mxu0 %v565
  %704 = vmatpush.msra.mxu0 %v563
  %705 = vmatpush.msra.mxu0 %v561
  %706 = vmatmul.f32.gmra.mxu0 %v626
  %v707 = vpop.f32.mrf.mxu0
  %v708 = vadd.f32 %v587, %v707
  %709 = vmatmul.f32.gmra.mxu0 %v629
  %v710 = vpop.f32.mrf.mxu0
  %v711 = vadd.f32 %v592, %v710
  %712 = vmatmul.f32.gmra.mxu0 %v632
  %v713 = vpop.f32.mrf.mxu0
  %v714 = vadd.f32 %v597, %v713
  %715 = vmatmul.f32.gmra.mxu0 %v635
  %v716 = vpop.f32.mrf.mxu0
  %v717 = vadd.f32 %v602, %v716
  %718 = vmatmul.f32.gmra.mxu0 %v638
  %v719 = vpop.f32.mrf.mxu0
  %v720 = vadd.f32 %v607, %v719
  %721 = vmatmul.f32.gmra.mxu0 %v641
  %v722 = vpop.f32.mrf.mxu0
  %v723 = vadd.f32 %v612, %v722
  %724 = vmatmul.f32.gmra.mxu0 %v644
  %v725 = vpop.f32.mrf.mxu0
  %v726 = vadd.f32 %v617, %v725
  %727 = vmatmul.f32.gmra.mxu0 %v647
  %v728 = vpop.f32.mrf.mxu0
  %v729 = vadd.f32 %v622, %v728
  %730 = vdwg.mxu0
  %v731 = vmul.f32 %v679, 0.5
  %v732 = vmul.f32 %v720, 0.5
  %v733 = vmul.f32 %v682, 0.5
  %v734 = vmul.f32 %v723, 0.5
  %v735 = vmul.f32 %v685, 0.5
  %v736 = vmul.f32 %v726, 0.5
  %v737 = vmul.f32 %v688, 0.5
  %v738 = vmul.f32 %v729, 0.5
  %v739 = vtanh.pop %v731
  %v740 = vtanh.pop %v732
  %v741 = vtanh.pop %v733
  %v742 = vtanh.pop %v734
  %v743 = vtanh.pop %v735
  %v744 = vtanh.pop %v736
  %v745 = vtanh.pop %v737
  %v746 = vtanh.pop %v738
  %v747 = vmul.f32 %v739, 0.5
  %v748 = vmul.f32 %v740, 0.5
  %v749 = vmul.f32 %v741, 0.5
  %v750 = vmul.f32 %v742, 0.5
  %v751 = vmul.f32 %v743, 0.5
  %v752 = vmul.f32 %v744, 0.5
  %v753 = vmul.f32 %v745, 0.5
  %v754 = vmul.f32 %v746, 0.5
  %v755 = vadd.f32 %v747, 0.5
  %v756 = vadd.f32 %v748, 0.5
  %v757 = vadd.f32 %v749, 0.5
  %v758 = vadd.f32 %v750, 0.5
  %v759 = vadd.f32 %v751, 0.5
  %v760 = vadd.f32 %v752, 0.5
  %v761 = vadd.f32 %v753, 0.5
  %v762 = vadd.f32 %v754, 0.5
  %v763 = vmul.f32 %v667, %v755
  %v764 = vmul.f32 %v708, %v756
  %v765 = vmul.f32 %v670, %v757
  %v766 = vmul.f32 %v711, %v758
  %v767 = vmul.f32 %v673, %v759
  %v768 = vmul.f32 %v714, %v760
  %v769 = vmul.f32 %v676, %v761
  %v770 = vmul.f32 %v717, %v762
  %v771 = vld [vmem:[%s8] sm:$0xff]
  %v772 = vld [vmem:[%s9] sm:$0xff]
  %774 = vset.pattern.permute.xlu0 0
  %775 = vperm.xlu0 %774, %v772
  %v776 = vpop.permute.xlu0 %775
  %v779 = vsel %vm624, %v771, 0
  %781 = vmatpush.msra.mxu0 0.0
  %782 = vmatpush.msra.mxu0 0.0
  %783 = vmatpush.msra.mxu0 0.0
  %784 = vmatpush.msra.mxu0 0.0
  %785 = vmatpush.msra.mxu0 0.0
  %786 = vmatpush.msra.mxu0 0.0
  %787 = vmatpush.msra.mxu0 0.0
  %788 = vmatpush.msra.mxu0 0.0
  %789 = vmatpush.msra.mxu0 0.0
  %790 = vmatpush.msra.mxu0 0.0
  %791 = vmatpush.msra.mxu0 0.0
  %792 = vmatpush.msra.mxu0 0.0
  %793 = vmatpush.msra.mxu0 %v769
  %794 = vmatpush.msra.mxu0 %v767
  %795 = vmatpush.msra.mxu0 %v765
  %796 = vmatpush.msra.mxu0 %v763
  %797 = vmatmul.f32.gmra.mxu0 %v779
  %v798 = vpop.f32.mrf.mxu0
  %v799 = vadd.f32 %v776, %v798
  %800 = vdwg.mxu0
  %801 = vmatpush.msra.mxu0 0.0
  %802 = vmatpush.msra.mxu0 0.0
  %803 = vmatpush.msra.mxu0 0.0
  %804 = vmatpush.msra.mxu0 0.0
  %805 = vmatpush.msra.mxu0 0.0
  %806 = vmatpush.msra.mxu0 0.0
  %807 = vmatpush.msra.mxu0 0.0
  %808 = vmatpush.msra.mxu0 0.0
  %809 = vmatpush.msra.mxu0 0.0
  %810 = vmatpush.msra.mxu0 0.0
  %811 = vmatpush.msra.mxu0 0.0
  %812 = vmatpush.msra.mxu0 0.0
  %813 = vmatpush.msra.mxu0 %v770
  %814 = vmatpush.msra.mxu0 %v768
  %815 = vmatpush.msra.mxu0 %v766
  %816 = vmatpush.msra.mxu0 %v764
  %817 = vmatmul.f32.gmra.mxu0 %v779
  %v818 = vpop.f32.mrf.mxu0
  %v819 = vadd.f32 %v776, %v818
  %820 = vdwg.mxu0
  %821 = vst [vmem:[%s10] sm:$0xff] %v799
  %822 = vst [vmem:[%s10 + $0x8] sm:$0xff] %v819
  // Predicated region
  $region42: #{_lambda_.1} parent=0 // pred_check
    _
  $region43: #{_lambda_.1} parent=0 // pred_check_branch
    %824 = sbr.rel (0) target = $region45
  $region44: #{_lambda_.1} parent=0 // pred_region
    _
  $region45: #{_lambda_.1} parent=0 // pred_fallthru
    _
  // Predicated region
  $region46: #{_lambda_.1} parent=0 // pred_check
    _
  $region47: #{_lambda_.1} parent=0 // pred_check_branch
    %826 = sbr.rel (0) target = $region49
  $region48: #{_lambda_.1} parent=0 // pred_region
    _
  $region49: #{_lambda_.1} parent=0 // pred_fallthru
    _

</llo_original>
